<compile_context>
chip_gen: v7x
topology: tpu7x:2x2x1
jax: 0.10.0
libtpu: 0.0.40
codegen_flags: <defaults>
</compile_context>

<pallas_src>
import jax
import jax.numpy as jnp
from jax.experimental import pallas as pl
from jax.experimental.pallas import tpu as pltpu

_LANE = 128


def _dice_sums_kernel(lg_ref, tg_ref, inter_ref, tsum_ref):
    """One batch element x one spatial tile: softmax over classes, accumulate
    sum(t * softmax(x)) and sum(t) into per-batch resident output blocks."""
    t_idx = pl.program_id(1)

    @pl.when(t_idx == 0)
    def _init():
        inter_ref[...] = jnp.zeros_like(inter_ref)
        tsum_ref[...] = jnp.zeros_like(tsum_ref)

    # Cast after the DMA (inputs arrive in their original dtype).
    x = lg_ref[0].astype(jnp.float32)   # (C, TS, 128)
    t = tg_ref[0].astype(jnp.float32)   # (C, TS, 128)

    # Numerically-stable softmax over the class axis. C is a leading dim, so
    # max/sum over it are across-vreg VPU ops, not cross-sublane XLU reduces.
    m = jnp.max(x, axis=0, keepdims=True)        # (1, TS, 128)
    e = jnp.exp(x - m)                           # EUP
    denom = jnp.sum(e, axis=0)                   # (TS, 128)
    num = jnp.sum(t * e, axis=0)                 # (TS, 128)  = sum_c t_c * e_c
    tsum = jnp.sum(t, axis=0)                    # (TS, 128)

    # One reciprocal per pixel instead of C divides of p = e / denom.
    # (kept exact so the result matches the pure-JAX reference to f32 rounding)
    contrib = num * pl.reciprocal(denom, approx=False)   # sum_c t_c * p_c

    ts = lg_ref.shape[2]
    sub = inter_ref.shape[1]
    if ts != sub:
        # Fold sublane rows down to the (SUB, 128) accumulator: layout
        # preserving reshape of the sublane axis + across-vreg VPU adds only.
        contrib = contrib.reshape(ts // sub, sub, _LANE).sum(axis=0)
        tsum = tsum.reshape(ts // sub, sub, _LANE).sum(axis=0)

    # Accumulate straight into the resident output blocks (no scratch, no
    # finalize copy; writeback happens automatically when the batch changes).
    inter_ref[...] = inter_ref[...] + contrib[None]
    tsum_ref[...] = tsum_ref[...] + tsum[None]


def multiclass_dice_loss(logits, targets, smooth=1e-6, *, max_tile_rows=1024):
    """logits, targets: (N, C, H, W) floats (targets already one-hot-like).
    Returns the scalar dice loss of the reference PyTorch module."""
    N, C, H, W = logits.shape
    assert targets.shape == logits.shape
    HW = H * W

    # Spatial tiling: SR rows of 128 pixels; TS rows per grid step.
    sr = pl.cdiv(HW, _LANE)
    if sr <= max_tile_rows:
        ts = sr                                  # single tile (full extent OK)
        sr_pad = sr
    else:
        ts = max((max_tile_rows // 8) * 8, 8)    # multiple of 8 sublanes
        sr_pad = pl.cdiv(sr, ts) * ts
    nt = sr_pad // ts
    hw_pad = sr_pad * _LANE
    sub = 8 if ts % 8 == 0 else ts

    lg = logits.reshape(N, C, HW)
    tg = targets.reshape(N, C, HW)
    if hw_pad != HW:
        # Exact: padded targets are 0, so padded pixels add nothing to either sum.
        pad = ((0, 0), (0, 0), (0, hw_pad - HW))
        lg = jnp.pad(lg, pad)
        tg = jnp.pad(tg, pad)
    # Keep the original dtype (no wrapper f32 copy); cast happens in-kernel.
    lg = lg.reshape(N, C, sr_pad, _LANE)
    tg = tg.reshape(N, C, sr_pad, _LANE)

    grid_spec = pltpu.PrefetchScalarGridSpec(
        num_scalar_prefetch=0,
        grid=(N, nt),
        in_specs=[
            pl.BlockSpec((1, C, ts, _LANE), lambda b, t: (b, 0, t, 0)),
            pl.BlockSpec((1, C, ts, _LANE), lambda b, t: (b, 0, t, 0)),
        ],
        out_specs=[
            # Lane-dense per-batch partial sums; block index constant along the
            # spatial axis so the block is resident (acts as the accumulator).
            pl.BlockSpec((1, sub, _LANE), lambda b, t: (b, 0, 0)),
            pl.BlockSpec((1, sub, _LANE), lambda b, t: (b, 0, 0)),
        ],
    )

    inter_p, tsum_p = pl.pallas_call(
        _dice_sums_kernel,
        out_shape=(
            jax.ShapeDtypeStruct((N, sub, _LANE), jnp.float32),
            jax.ShapeDtypeStruct((N, sub, _LANE), jnp.float32),
        ),
        grid_spec=grid_spec,
        compiler_params=pltpu.CompilerParams(
            dimension_semantics=("parallel", "arbitrary"),
            vmem_limit_bytes=32 * 1024 * 1024,
        ),
    )(lg, tg)

    # Tiny final reductions done in the wrapper (one XLA reduce over N*8*128
    # elements) instead of in-kernel XLU reductions + narrow stores.
    total = jnp.float32(N * C * HW)
    intersection = jnp.sum(inter_p) / total   # (targets_one_hot * probabilities).mean()
    mod_a = intersection                      # .mean() of a scalar == itself
    mod_b = jnp.sum(tsum_p) / total           # targets.mean()
    # TODO(synk): the PyTorch forward prints mod_a/mod_b/intersection; host-side print omitted.
    dice_coefficient = 2.0 * intersection / (mod_a + mod_b + smooth)
    return -jnp.log(dice_coefficient)


def _ref_dice_loss(logits, targets, smooth=1e-6):
    """Pure-JAX reference mirroring the PyTorch forward."""
    p = jax.nn.softmax(logits.astype(jnp.float32), axis=1)
    t = targets.astype(jnp.float32)
    inter = jnp.mean(t * p)
    mod_a = inter
    mod_b = jnp.mean(t)
    dice = 2.0 * inter / (mod_a + mod_b + smooth)
    return -jnp.log(dice)


if __name__ == "__main__":
    key = jax.random.PRNGKey(0)

    def _case(n, c, h, w, dtype=jnp.float32, tol=1e-5, **kw):
        k1, k2 = jax.random.split(jax.random.fold_in(key, h * w + n))
        logits = jax.random.normal(k1, (n, c, h, w), dtype=jnp.float32).astype(dtype)
        labels = jax.random.randint(k2, (n, h, w), 0, c)
        # one-hot targets in NCHW, matching logits layout (to_onehot=False).
        targets = jax.nn.one_hot(labels, c, dtype=dtype).transpose(0, 3, 1, 2)
        loss = jax.block_until_ready(multiclass_dice_loss(logits, targets, **kw))
        ref = _ref_dice_loss(logits, targets)
        assert jnp.allclose(loss, ref, atol=tol, rtol=tol), (float(loss), float(ref))

    # Module-sized case: batch=2, classes=4, 16x16 spatial.
    _case(2, 4, 16, 16)
    # Lane-padding path (H*W not a multiple of 128).
    _case(2, 4, 18, 18)
    # Multi-tile accumulation path (small tile to exercise the spatial grid axis).
    _case(2, 4, 64, 64, max_tile_rows=8)
    # In-kernel cast path (bf16 inputs DMA'd as-is, cast to f32 inside the kernel).
    _case(2, 4, 32, 32, dtype=jnp.bfloat16, tol=1e-4)

    print("KERNEL_OK")
</pallas_src>

<mosaic_0001>
module attributes {stable_mosaic.version = 11 : i64} {
  func.func @_dice_sums_kernel(%arg0: i32, %arg1: i32, %arg2: memref<1x4x2x128xf32, #tpu.memory_space<vmem>>, %arg3: memref<1x4x2x128xf32, #tpu.memory_space<vmem>>, %arg4: memref<1x2x128xf32, #tpu.memory_space<vmem>>, %arg5: memref<1x2x128xf32, #tpu.memory_space<vmem>>) attributes {dimension_semantics = [#tpu.dimension_semantics<parallel>, #tpu.dimension_semantics<arbitrary>], iteration_bounds = array<i64: 2, 1>, scalar_prefetch = 0 : i64, scratch_operands = 0 : i64, tpu.core_type = #tpu.core_type<tc>, window_params = [{transform_indices = @transform_0, window_bounds = array<i64: 1, 4, 2, 128>}, {transform_indices = @transform_1, window_bounds = array<i64: 1, 4, 2, 128>}, {transform_indices = @transform_2, window_bounds = array<i64: 1, 2, 128>}, {transform_indices = @transform_3, window_bounds = array<i64: 1, 2, 128>}]} {
    %c0_i32 = arith.constant 0 : i32
    %0 = arith.cmpi eq, %arg1, %c0_i32 : i32
    %1 = arith.extui %0 : i1 to i32
    %c0_i32_0 = arith.constant 0 : i32
    %2 = arith.cmpi ne, %1, %c0_i32_0 : i32
    scf.if %2 {
      %cst_23 = arith.constant 0.000000e+00 : f32
      %26 = vector.broadcast %cst_23 : f32 to vector<1x2x128xf32>
      %c0_24 = arith.constant 0 : index
      %c0_25 = arith.constant 0 : index
      %c0_26 = arith.constant 0 : index
      %27 = vector.load %arg4[%c0_24, %c0_25, %c0_26] : memref<1x2x128xf32, #tpu.memory_space<vmem>>, vector<1x2x128xf32>
      tpu.vector_store %arg4[%c0_24, %c0_25, %c0_26], %26 {strides = array<i32>} : memref<1x2x128xf32, #tpu.memory_space<vmem>>, vector<1x2x128xf32>,
      %cst_27 = arith.constant 0.000000e+00 : f32
      %28 = vector.broadcast %cst_27 : f32 to vector<1x2x128xf32>
      %c0_28 = arith.constant 0 : index
      %c0_29 = arith.constant 0 : index
      %c0_30 = arith.constant 0 : index
      %29 = vector.load %arg5[%c0_28, %c0_29, %c0_30] : memref<1x2x128xf32, #tpu.memory_space<vmem>>, vector<1x2x128xf32>
      tpu.vector_store %arg5[%c0_28, %c0_29, %c0_30], %28 {strides = array<i32>} : memref<1x2x128xf32, #tpu.memory_space<vmem>>, vector<1x2x128xf32>,
    } else {
    }
    %c0 = arith.constant 0 : index
    %c0_1 = arith.constant 0 : index
    %c0_2 = arith.constant 0 : index
    %c0_3 = arith.constant 0 : index
    %3 = vector.load %arg2[%c0, %c0_1, %c0_2, %c0_3] : memref<1x4x2x128xf32, #tpu.memory_space<vmem>>, vector<1x4x2x128xf32>
    %4 = vector.shape_cast %3 : vector<1x4x2x128xf32> to vector<4x2x128xf32>
    %c0_4 = arith.constant 0 : index
    %c0_5 = arith.constant 0 : index
    %c0_6 = arith.constant 0 : index
    %c0_7 = arith.constant 0 : index
    %5 = vector.load %arg3[%c0_4, %c0_5, %c0_6, %c0_7] : memref<1x4x2x128xf32, #tpu.memory_space<vmem>>, vector<1x4x2x128xf32>
    %6 = vector.shape_cast %5 : vector<1x4x2x128xf32> to vector<4x2x128xf32>
    %cst = arith.constant dense<0xFF800000> : vector<2x128xf32>
    %7 = vector.multi_reduction <maximumf>, %4, %cst [0] : vector<4x2x128xf32> to vector<2x128xf32>
    %8 = vector.shape_cast %7 : vector<2x128xf32> to vector<1x2x128xf32>
    %9 = vector.broadcast %8 : vector<1x2x128xf32> to vector<4x2x128xf32>
    %10 = arith.subf %4, %9 : vector<4x2x128xf32>
    %11 = math.exp %10 : vector<4x2x128xf32>
    %cst_8 = arith.constant dense<0.000000e+00> : vector<2x128xf32>
    %12 = vector.multi_reduction <add>, %11, %cst_8 [0] : vector<4x2x128xf32> to vector<2x128xf32>
    %13 = arith.mulf %6, %11 : vector<4x2x128xf32>
    %cst_9 = arith.constant dense<0.000000e+00> : vector<2x128xf32>
    %14 = vector.multi_reduction <add>, %13, %cst_9 [0] : vector<4x2x128xf32> to vector<2x128xf32>
    %cst_10 = arith.constant dense<0.000000e+00> : vector<2x128xf32>
    %15 = vector.multi_reduction <add>, %6, %cst_10 [0] : vector<4x2x128xf32> to vector<2x128xf32>
    %16 = tpu.reciprocal %12 : vector<2x128xf32> -> vector<2x128xf32>
    %17 = arith.mulf %14, %16 : vector<2x128xf32>
    %c0_11 = arith.constant 0 : index
    %c0_12 = arith.constant 0 : index
    %c0_13 = arith.constant 0 : index
    %18 = vector.load %arg4[%c0_11, %c0_12, %c0_13] : memref<1x2x128xf32, #tpu.memory_space<vmem>>, vector<1x2x128xf32>
    %19 = vector.shape_cast %17 : vector<2x128xf32> to vector<1x2x128xf32>
    %20 = arith.addf %18, %19 : vector<1x2x128xf32>
    %c0_14 = arith.constant 0 : index
    %c0_15 = arith.constant 0 : index
    %c0_16 = arith.constant 0 : index
    %21 = vector.load %arg4[%c0_14, %c0_15, %c0_16] : memref<1x2x128xf32, #tpu.memory_space<vmem>>, vector<1x2x128xf32>
    tpu.vector_store %arg4[%c0_14, %c0_15, %c0_16], %20 {strides = array<i32>} : memref<1x2x128xf32, #tpu.memory_space<vmem>>, vector<1x2x128xf32>,
    %c0_17 = arith.constant 0 : index
    %c0_18 = arith.constant 0 : index
    %c0_19 = arith.constant 0 : index
    %22 = vector.load %arg5[%c0_17, %c0_18, %c0_19] : memref<1x2x128xf32, #tpu.memory_space<vmem>>, vector<1x2x128xf32>
    %23 = vector.shape_cast %15 : vector<2x128xf32> to vector<1x2x128xf32>
    %24 = arith.addf %22, %23 : vector<1x2x128xf32>
    %c0_20 = arith.constant 0 : index
    %c0_21 = arith.constant 0 : index
    %c0_22 = arith.constant 0 : index
    %25 = vector.load %arg5[%c0_20, %c0_21, %c0_22] : memref<1x2x128xf32, #tpu.memory_space<vmem>>, vector<1x2x128xf32>
    tpu.vector_store %arg5[%c0_20, %c0_21, %c0_22], %24 {strides = array<i32>} : memref<1x2x128xf32, #tpu.memory_space<vmem>>, vector<1x2x128xf32>,
    return
  }
  func.func @transform_0(%arg0: i32, %arg1: i32) -> (i32, i32, i32, i32) {
    %c0_i32 = arith.constant 0 : i32
    %c0_i32_0 = arith.constant 0 : i32
    %c0_i32_1 = arith.constant 0 : i32
    return %arg0, %c0_i32, %arg1, %c0_i32_0 : i32, i32, i32, i32
  }
  func.func @transform_1(%arg0: i32, %arg1: i32) -> (i32, i32, i32, i32) {
    %c0_i32 = arith.constant 0 : i32
    %c0_i32_0 = arith.constant 0 : i32
    %c0_i32_1 = arith.constant 0 : i32
    return %arg0, %c0_i32, %arg1, %c0_i32_0 : i32, i32, i32, i32
  }
  func.func @transform_2(%arg0: i32, %arg1: i32) -> (i32, i32, i32) {
    %c0_i32 = arith.constant 0 : i32
    %c0_i32_0 = arith.constant 0 : i32
    %c0_i32_1 = arith.constant 0 : i32
    return %arg0, %c0_i32, %c0_i32_0 : i32, i32, i32
  }
  func.func @transform_3(%arg0: i32, %arg1: i32) -> (i32, i32, i32) {
    %c0_i32 = arith.constant 0 : i32
    %c0_i32_0 = arith.constant 0 : i32
    %c0_i32_1 = arith.constant 0 : i32
    return %arg0, %c0_i32, %c0_i32_0 : i32, i32, i32
  }
}

</mosaic_0001>

<llo_original>
// kernel: tpu_custom_call.1
$region0: #{tpu_custom_call.1}
  #allocation0 [shape = 'u32[]', space=smem, size = 0x4, offset = 0x4, fixed_abs, tag = 'smem constant byte address 0x4 - core index']
  #allocation1 [shape = 'u32[144,128]{1,0:T(1,128)}', space=vmem, size = 0x12000, scoped, tag = 'internal scratch']
  %s0 = inlined_call_operand.hbm [shape: f32[2,4,2,128], index: 0, kind: input, shape index: {}]
  %s1 = inlined_call_operand.hbm [shape: f32[2,4,2,128], index: 1, kind: input, shape index: {}]
  %s2 = inlined_call_operand.hbm [shape: f32[2,2,128], index: 2, kind: output, shape index: {0}]
  %s3 = inlined_call_operand.hbm [shape: f32[2,2,128], index: 3, kind: output, shape index: {1}]
  %4 = xla_tuple %s2, %s3
  %s5 = sld [smem:[#allocation0]]
  $region61: #{tpu_custom_call.1} parent=0
    _
  %s7 = ssub.s32 1, %s5
  %s8 = scalar_select 0, %s7, %s5
  $region1: #{tpu_custom_call.1} parent=0
    #allocation2 [shape = 'u8[8192]{0}', space=vmem, size = 0x2000, scoped, tag = 'input window, operand 0']
    #allocation3 [shape = 's32[2]{0}', space=sflag, size = 0x8, scoped, tag = 'scoped memory for tpu_custom_call.1']
    #allocation4 [shape = 's32[2]{0}', space=sflag, size = 0x8, scoped, tag = 'scoped memory for tpu_custom_call.1']
    #allocation5 [shape = 'u8[8192]{0}', space=vmem, size = 0x2000, scoped, tag = 'input window, operand 1']
    #allocation6 [shape = 's32[2]{0}', space=sflag, size = 0x8, scoped, tag = 'scoped memory for tpu_custom_call.1']
    #allocation7 [shape = 'u8[2048]{0}', space=vmem, size = 0x800, scoped, tag = 'output window, operand 0']
    #allocation8 [shape = 'u8[2048]{0}', space=vmem, size = 0x800, scoped, tag = 'output window, operand 1']
    #allocation9 [shape = 's32[2]{0}', space=sflag, size = 0x8, scoped, tag = 'scoped memory for tpu_custom_call.1']
    %9 = vsyncpa [#allocation3], 0
    %s10 = scalar_lea.sflag [#allocation3], 1
    %11 = vsyncpa %s10, 0
    %12 = vsyncpa [#allocation6], 0
    %s13 = scalar_lea.sflag [#allocation6], 1
    %14 = vsyncpa %s13, 0
    %15 = vsyncpa [#allocation4], 0
    %s16 = scalar_lea.sflag [#allocation4], 1
    %17 = vsyncpa %s16, 0
    %18 = vsyncpa [#allocation9], 0
    %s19 = scalar_lea.sflag [#allocation9], 1
    %20 = vsyncpa %s19, 0
    loop: start=0, step=1, limit=4
    $region2: #{tpu_custom_call.1} parent=1 // loop_pre_header
      _
    $region3: #{tpu_custom_call.1} parent=1 // loop_header
      %s22 = sphi 0, %s26
      %p23 = scmp.ge.s32.totalorder %s22, 4
      %s29 = sphi 0, %s41
      %s30 = sphi 0, %s37
      %s31 = sphi 0, %s29
      %s32 = sphi 0, %s30
      %s33 = sphi 0, %s31
      %s34 = sphi 0, %s32
      %s46 = sphi 0, %s48
      %s49 = sphi 0, %s46
      %s50 = sphi 0, %s49
      %s66 = sphi 0, %s50
      %s74 = sphi 0, %s76
      %s77 = sphi 0, %s74
      %s78 = sphi 0, %s77
      %s94 = sphi 0, %s78
      %s100 = sphi 0, %s102
      %s103 = sphi 0, %s100
      %s104 = sphi 0, %s103
      %s120 = sphi 0, %s104
      %s126 = sphi 0, %s128
      %s129 = sphi 0, %s126
      %s130 = sphi 0, %s129
      %s146 = sphi 0, %s130
    $region4: #{tpu_custom_call.1} parent=1 // loop_header_branch
      %25 = sbr.rel (%p23) target = $region8
    $region5: #{tpu_custom_call.1} parent=1 // loop_body
      %s27 = ssub.s32 %s22, 1
      %s28 = ssub.s32 %s22, 2
      %s35 = sadd.s32 1, %s30
      %p36 = scmp.ge.s32.totalorder %s35, 1
      %s37 = scalar_select %p36, 0, %s35
      %s38 = sadd.s32 1, %s29
      %s39 = scalar_select %p36, %s38, %s29
      %p40 = scmp.ge.s32.totalorder %s39, 2
      %s41 = scalar_select %p40, 0, %s39
      %s42 = ssub.s32 %s29, %s41
      %s43 = ssub.s32 %s30, %s37
      %s44 = sor.u32 %s42, %s43
      %p45 = scmp.eq.s32.totalorder %s44, 0
      %s47 = sadd.s32 %s46, 1
      %s48 = scalar_select %p45, %s46, %s47
      %p51 = pneg %p45
      %p52 = scmp.eq.s32.totalorder %s22, 1
      %p53 = por %p51, %p52
      %p54 = scmp.ne.s32.totalorder %s46, %s49
      %p55 = scmp.eq.s32.totalorder %s22, 0
      %p56 = por %p54, %p55
      %p57 = scmp.ne.s32.totalorder %s46, %s49
      %p58 = scmp.eq.s32.totalorder %s27, 1
      %p59 = por %p57, %p58
      %p60 = scmp.ne.s32.totalorder %s49, %s50
      %p61 = scmp.eq.s32.totalorder %s27, 0
      %p62 = por %p60, %p61
      %p63 = scmp.ne.s32.totalorder %s49, %s50
      %p64 = scmp.eq.s32.totalorder %s28, 1
      %p65 = por %p63, %p64
      %p67 = scmp.ne.s32.totalorder %s50, %s66
      %p68 = scmp.eq.s32.totalorder %s28, 0
      %p69 = por %p67, %p68
      %s70 = ssub.s32 %s29, %s41
      %s71 = ssub.s32 %s30, %s37
      %s72 = sor.u32 %s70, %s71
      %p73 = scmp.eq.s32.totalorder %s72, 0
      %s75 = sadd.s32 %s74, 1
      %s76 = scalar_select %p73, %s74, %s75
      %p79 = pneg %p73
      %p80 = scmp.eq.s32.totalorder %s22, 1
      %p81 = por %p79, %p80
      %p82 = scmp.ne.s32.totalorder %s74, %s77
      %p83 = scmp.eq.s32.totalorder %s22, 0
      %p84 = por %p82, %p83
      %p85 = scmp.ne.s32.totalorder %s74, %s77
      %p86 = scmp.eq.s32.totalorder %s27, 1
      %p87 = por %p85, %p86
      %p88 = scmp.ne.s32.totalorder %s77, %s78
      %p89 = scmp.eq.s32.totalorder %s27, 0
      %p90 = por %p88, %p89
      %p91 = scmp.ne.s32.totalorder %s77, %s78
      %p92 = scmp.eq.s32.totalorder %s28, 1
      %p93 = por %p91, %p92
      %p95 = scmp.ne.s32.totalorder %s78, %s94
      %p96 = scmp.eq.s32.totalorder %s28, 0
      %p97 = por %p95, %p96
      %s98 = ssub.s32 %s29, %s41
      %p99 = scmp.eq.s32.totalorder %s98, 0
      %s101 = sadd.s32 %s100, 1
      %s102 = scalar_select %p99, %s100, %s101
      %p105 = pneg %p99
      %p106 = scmp.eq.s32.totalorder %s22, 1
      %p107 = por %p105, %p106
      %p108 = scmp.ne.s32.totalorder %s100, %s103
      %p109 = scmp.eq.s32.totalorder %s22, 0
      %p110 = por %p108, %p109
      %p111 = scmp.ne.s32.totalorder %s100, %s103
      %p112 = scmp.eq.s32.totalorder %s27, 1
      %p113 = por %p111, %p112
      %p114 = scmp.ne.s32.totalorder %s103, %s104
      %p115 = scmp.eq.s32.totalorder %s27, 0
      %p116 = por %p114, %p115
      %p117 = scmp.ne.s32.totalorder %s103, %s104
      %p118 = scmp.eq.s32.totalorder %s28, 1
      %p119 = por %p117, %p118
      %p121 = scmp.ne.s32.totalorder %s104, %s120
      %p122 = scmp.eq.s32.totalorder %s28, 0
      %p123 = por %p121, %p122
      %s124 = ssub.s32 %s29, %s41
      %p125 = scmp.eq.s32.totalorder %s124, 0
      %s127 = sadd.s32 %s126, 1
      %s128 = scalar_select %p125, %s126, %s127
      %p131 = pneg %p125
      %p132 = scmp.eq.s32.totalorder %s22, 1
      %p133 = por %p131, %p132
      %p134 = scmp.ne.s32.totalorder %s126, %s129
      %p135 = scmp.eq.s32.totalorder %s22, 0
      %p136 = por %p134, %p135
      %p137 = scmp.ne.s32.totalorder %s126, %s129
      %p138 = scmp.eq.s32.totalorder %s27, 1
      %p139 = por %p137, %p138
      %p140 = scmp.ne.s32.totalorder %s129, %s130
      %p141 = scmp.eq.s32.totalorder %s27, 0
      %p142 = por %p140, %p141
      %p143 = scmp.ne.s32.totalorder %s129, %s130
      %p144 = scmp.eq.s32.totalorder %s28, 1
      %p145 = por %p143, %p144
      %p147 = scmp.ne.s32.totalorder %s130, %s146
      %p148 = scmp.eq.s32.totalorder %s28, 0
      %p149 = por %p147, %p148
      %p150 = scmp.le.s32.totalorder 1, %s22
      %p151 = scmp.lt.s32.totalorder %s22, 3
      %p152 = pnand %p150, %p151
      %p153 = pneg %p152
      // Predicated region
      $region9: #{tpu_custom_call.1} parent=5 // pred_check
        _
      $region10: #{tpu_custom_call.1} parent=5 // pred_check_branch
        %155 = sbr.rel (%p152) target = $region12
      $region11: #{tpu_custom_call.1} parent=5 // pred_region
        %s156 = ssub.s32 %s22, 1
      $region12: #{tpu_custom_call.1} parent=5 // pred_fallthru
        _
      %p157 = scmp.lt.s32.totalorder %s22, 2
      // Predicated region
      $region13: #{tpu_custom_call.1} parent=5 // pred_check
        %p158 = pneg %p157
      $region14: #{tpu_custom_call.1} parent=5 // pred_check_branch
        %160 = sbr.rel (%p158) target = $region16
      $region15: #{tpu_custom_call.1} parent=5 // pred_region
        // Predicated region
        $region17: #{tpu_custom_call.1} parent=15 // pred_check
          %p161 = pneg %p56
        $region18: #{tpu_custom_call.1} parent=15 // pred_check_branch
          %163 = sbr.rel (%p161) target = $region20
        $region19: #{tpu_custom_call.1} parent=15 // pred_region
          %s164 = sand.u32 %s46, 1
          %s165 = scalar_lea.sflag [#allocation3], %s164
          %s166 = sand.u32 %s46, 1
          %s167 = smul.addr %s166, 8
          %s168 = scalar_lea.vmem [#allocation2], %s167
          %s170 = ssub.s32 128, 128
          %171 = vsyncadd %s165, %s170
          %s172 = smul.addr %s29, 4
          %s173 = sadd.s32 %s30, %s172
          %s174 = smul.addr %s173, 32
          %s175 = scalar_lea.hbm %s0, %s174
          %s176 = sshll.u32 %s168, 4
          %s177 = int_to_ptr.vmem [resolvable:$true] %s176
          %182 = dma.hbm_to_vmem [thread:$0]  %s175, 128, %s177, %s165, 32, 32, 2
        $region20: #{tpu_custom_call.1} parent=15 // pred_fallthru
          _
        // Predicated region
        $region21: #{tpu_custom_call.1} parent=15 // pred_check
          %p183 = pneg %p84
        $region22: #{tpu_custom_call.1} parent=15 // pred_check_branch
          %185 = sbr.rel (%p183) target = $region24
        $region23: #{tpu_custom_call.1} parent=15 // pred_region
          %s186 = sand.u32 %s74, 1
          %s187 = scalar_lea.sflag [#allocation6], %s186
          %s188 = sand.u32 %s74, 1
          %s189 = smul.addr %s188, 8
          %s190 = scalar_lea.vmem [#allocation5], %s189
          %s192 = ssub.s32 128, 128
          %193 = vsyncadd %s187, %s192
          %s194 = smul.addr %s29, 4
          %s195 = sadd.s32 %s30, %s194
          %s196 = smul.addr %s195, 32
          %s197 = scalar_lea.hbm %s1, %s196
          %s198 = sshll.u32 %s190, 4
          %s199 = int_to_ptr.vmem [resolvable:$true] %s198
          %204 = dma.hbm_to_vmem [thread:$0]  %s197, 128, %s199, %s187, 32, 32, 2
        $region24: #{tpu_custom_call.1} parent=15 // pred_fallthru
          _
      $region16: #{tpu_custom_call.1} parent=5 // pred_fallthru
        _
      %p205 = scmp.le.s32.totalorder 1, %s22
      %p206 = scmp.lt.s32.totalorder %s22, 3
      %p207 = pnand %p205, %p206
      %p208 = pneg %p207
      // Predicated region
      $region25: #{tpu_custom_call.1} parent=5 // pred_check
        _
      $region26: #{tpu_custom_call.1} parent=5 // pred_check_branch
        %210 = sbr.rel (%p207) target = $region28
      $region27: #{tpu_custom_call.1} parent=5 // pred_region
        %s211 = ssub.s32 %s22, 1
        %s212 = sand.u32 %s49, 1
        %s213 = scalar_lea.sflag [#allocation3], %s212
        %s214 = sand.u32 %s49, 1
        %s215 = smul.addr %s214, 8
        %s216 = scalar_lea.vmem [#allocation2], %s215
        // Predicated region
        $region29: #{tpu_custom_call.1} parent=27 // pred_check
          %p217 = pneg %p62
        $region30: #{tpu_custom_call.1} parent=27 // pred_check_branch
          %219 = sbr.rel (%p217) target = $region32
        $region31: #{tpu_custom_call.1} parent=27 // pred_region
          %220 = dma.done %s213, 128
        $region32: #{tpu_custom_call.1} parent=27 // pred_fallthru
          _
        %s221 = sand.u32 %s77, 1
        %s222 = scalar_lea.sflag [#allocation6], %s221
        %s223 = sand.u32 %s77, 1
        %s224 = smul.addr %s223, 8
        %s225 = scalar_lea.vmem [#allocation5], %s224
        // Predicated region
        $region33: #{tpu_custom_call.1} parent=27 // pred_check
          %p226 = pneg %p90
        $region34: #{tpu_custom_call.1} parent=27 // pred_check_branch
          %228 = sbr.rel (%p226) target = $region36
        $region35: #{tpu_custom_call.1} parent=27 // pred_region
          %229 = dma.done %s222, 128
        $region36: #{tpu_custom_call.1} parent=27 // pred_fallthru
          _
        %s230 = sand.u32 %s49, 1
        %s231 = scalar_lea.sflag [#allocation3], %s230
        %s232 = sand.u32 %s49, 1
        %s233 = smul.addr %s232, 8
        %s234 = scalar_lea.vmem [#allocation2], %s233
        %p235 = pneg %p62
        %p236 = pneg %p59
        %s237 = sand.u32 %s77, 1
        %s238 = scalar_lea.sflag [#allocation6], %s237
        %s239 = sand.u32 %s77, 1
        %s240 = smul.addr %s239, 8
        %s241 = scalar_lea.vmem [#allocation5], %s240
        %p242 = pneg %p90
        %p243 = pneg %p87
        %p244 = pneg %p116
        %p245 = pneg %p113
        %s246 = sand.u32 %s103, 1
        %s247 = scalar_lea.sflag [#allocation4], %s246
        %s248 = sand.u32 %s103, 1
        %s249 = smul.addr %s248, 2
        %s250 = scalar_lea.vmem [#allocation7], %s249
        %p251 = pneg %p142
        %p252 = pneg %p139
        %s253 = sand.u32 %s129, 1
        %s254 = scalar_lea.sflag [#allocation9], %s253
        %s255 = sand.u32 %s129, 1
        %s256 = smul.addr %s255, 2
        %s257 = scalar_lea.vmem [#allocation8], %s256
        %p258 = scmp.eq.s32.totalorder %s32, 0
        // Predicated region
        $region37: #{tpu_custom_call.1} parent=27 // pred_check
          %p259 = pneg %p258
        $region38: #{tpu_custom_call.1} parent=27 // pred_check_branch
          %261 = sbr.rel (%p259) target = $region40
        $region39: #{tpu_custom_call.1} parent=27 // pred_region
          %262 = vst [vmem:[%s250] sm:$0x3] 0.0
          %263 = vst [vmem:[%s257] sm:$0x3] 0.0
        $region40: #{tpu_custom_call.1} parent=27 // pred_fallthru
          _
        %v264 = vld [vmem:[%s216] sm:$0x3]
        %v265 = vld [vmem:[%s216 + $0x2] sm:$0x3]
        %v266 = vld [vmem:[%s216 + $0x4] sm:$0x3]
        %v267 = vld [vmem:[%s216 + $0x6] sm:$0x3]
        %v268 = vld [vmem:[%s225] sm:$0x3]
        %v269 = vld [vmem:[%s225 + $0x2] sm:$0x3]
        %v270 = vld [vmem:[%s225 + $0x4] sm:$0x3]
        %v271 = vld [vmem:[%s225 + $0x6] sm:$0x3]
        %vm272 = vcmask 1041408
        %v273 = vsel %vm272, %v264, -inf
        %v274 = vsel %vm272, %v265, -inf
        %v275 = vsel %vm272, %v266, -inf
        %v276 = vsel %vm272, %v267, -inf
        %v277 = vmax.f32 %v273, %v274
        %v278 = vmax.f32 %v275, %v276
        %v279 = vmax.f32 %v277, %v278
        %v280 = vsub.f32 %v264, %v279
        %v281 = vsub.f32 %v265, %v279
        %v282 = vsub.f32 %v266, %v279
        %v283 = vsub.f32 %v267, %v279
        %v284 = vmul.f32 %v280, 1.442695
        %v285 = vpow.pop %v284
        %v286 = vmul.f32 %v281, 1.442695
        %v287 = vpow.pop %v286
        %v288 = vmul.f32 %v282, 1.442695
        %v289 = vpow.pop %v288
        %v290 = vmul.f32 %v283, 1.442695
        %v291 = vpow.pop %v290
        %v292 = vsel %vm272, %v285, 0.0
        %v293 = vsel %vm272, %v287, 0.0
        %v294 = vadd.f32 %v292, %v293
        %v295 = vsel %vm272, %v289, 0.0
        %v296 = vadd.f32 %v294, %v295
        %v297 = vsel %vm272, %v291, 0.0
        %v298 = vadd.f32 %v296, %v297
        %v299 = vmul.f32 %v268, %v285
        %v300 = vmul.f32 %v269, %v287
        %v301 = vmul.f32 %v270, %v289
        %v302 = vmul.f32 %v271, %v291
        %v303 = vsel %vm272, %v299, 0.0
        %v304 = vsel %vm272, %v300, 0.0
        %v305 = vadd.f32 %v303, %v304
        %v306 = vsel %vm272, %v301, 0.0
        %v307 = vadd.f32 %v305, %v306
        %v308 = vsel %vm272, %v302, 0.0
        %v309 = vadd.f32 %v307, %v308
        %v310 = vsel %vm272, %v268, 0.0
        %v311 = vsel %vm272, %v269, 0.0
        %v312 = vadd.f32 %v310, %v311
        %v313 = vsel %vm272, %v270, 0.0
        %v314 = vadd.f32 %v312, %v313
        %v315 = vsel %vm272, %v271, 0.0
        %v316 = vadd.f32 %v314, %v315
        %v317 = vrcp.pop %v298
        %v318 = vmul.f32 %v309, %v317
        %v319 = vld [vmem:[%s250] sm:$0x3]
        %v320 = vadd.f32 %v319, %v318
        %321 = vst [vmem:[%s250] sm:$0x3] %v320
        %v322 = vld [vmem:[%s257] sm:$0x3]
        %v323 = vadd.f32 %v322, %v316
        %324 = vst [vmem:[%s257] sm:$0x3] %v323
        %s325 = sand.u32 %s103, 1
        %s326 = scalar_lea.sflag [#allocation4], %s325
        %s327 = sand.u32 %s103, 1
        %s328 = smul.addr %s327, 2
        %s329 = scalar_lea.vmem [#allocation7], %s328
        %s330 = sand.u32 %s129, 1
        %s331 = scalar_lea.sflag [#allocation9], %s330
        %s332 = sand.u32 %s129, 1
        %s333 = smul.addr %s332, 2
        %s334 = scalar_lea.vmem [#allocation8], %s333
        // Predicated region
        $region41: #{tpu_custom_call.1} parent=27 // pred_check
          %p335 = pneg %p113
        $region42: #{tpu_custom_call.1} parent=27 // pred_check_branch
          %337 = sbr.rel (%p335) target = $region44
        $region43: #{tpu_custom_call.1} parent=27 // pred_region
          %s339 = ssub.s32 32, 32
          %340 = vsyncadd %s326, %s339
          %s341 = smul.addr %s31, 32
          %s342 = scalar_lea.hbm %s2, %s341
          %s344 = sshll.u32 %s329, 4
          %s345 = int_to_ptr.vmem [resolvable:$true] %s344
          %347 = dma.vmem_to_hbm [thread:$0]  %s345, 32, %s342, %s326
        $region44: #{tpu_custom_call.1} parent=27 // pred_fallthru
          _
        // Predicated region
        $region45: #{tpu_custom_call.1} parent=27 // pred_check
          %p348 = pneg %p139
        $region46: #{tpu_custom_call.1} parent=27 // pred_check_branch
          %350 = sbr.rel (%p348) target = $region48
        $region47: #{tpu_custom_call.1} parent=27 // pred_region
          %s352 = ssub.s32 32, 32
          %353 = vsyncadd %s331, %s352
          %s354 = smul.addr %s31, 32
          %s355 = scalar_lea.hbm %s3, %s354
          %s357 = sshll.u32 %s334, 4
          %s358 = int_to_ptr.vmem [resolvable:$true] %s357
          %360 = dma.vmem_to_hbm [thread:$0]  %s358, 32, %s355, %s331
        $region48: #{tpu_custom_call.1} parent=27 // pred_fallthru
          _
      $region28: #{tpu_custom_call.1} parent=5 // pred_fallthru
        _
      %p361 = scmp.le.s32.totalorder 2, %s22
      // Predicated region
      $region49: #{tpu_custom_call.1} parent=5 // pred_check
        %p362 = pneg %p361
      $region50: #{tpu_custom_call.1} parent=5 // pred_check_branch
        %364 = sbr.rel (%p362) target = $region52
      $region51: #{tpu_custom_call.1} parent=5 // pred_region
        %s365 = ssub.s32 %s22, 2
        // Predicated region
        $region53: #{tpu_custom_call.1} parent=51 // pred_check
          %p366 = pneg %p119
        $region54: #{tpu_custom_call.1} parent=51 // pred_check_branch
          %368 = sbr.rel (%p366) target = $region56
        $region55: #{tpu_custom_call.1} parent=51 // pred_region
          %s369 = sand.u32 %s104, 1
          %s370 = scalar_lea.sflag [#allocation4], %s369
          %s371 = sand.u32 %s104, 1
          %s372 = smul.addr %s371, 2
          %s373 = scalar_lea.vmem [#allocation7], %s372
          %374 = dma.done %s370, 32
        $region56: #{tpu_custom_call.1} parent=51 // pred_fallthru
          _
        // Predicated region
        $region57: #{tpu_custom_call.1} parent=51 // pred_check
          %p375 = pneg %p145
        $region58: #{tpu_custom_call.1} parent=51 // pred_check_branch
          %377 = sbr.rel (%p375) target = $region60
        $region59: #{tpu_custom_call.1} parent=51 // pred_region
          %s378 = sand.u32 %s130, 1
          %s379 = scalar_lea.sflag [#allocation9], %s378
          %s380 = sand.u32 %s130, 1
          %s381 = smul.addr %s380, 2
          %s382 = scalar_lea.vmem [#allocation8], %s381
          %383 = dma.done %s379, 32
        $region60: #{tpu_custom_call.1} parent=51 // pred_fallthru
          _
      $region52: #{tpu_custom_call.1} parent=5 // pred_fallthru
        _
    $region6: #{tpu_custom_call.1} parent=1 // loop_footer
      %s26 = sadd.s32 1, %s22
    $region7: #{tpu_custom_call.1} parent=1 // loop_footer_branch
      %21 = sbr.rel target = $region3
    $region8: #{tpu_custom_call.1} parent=1 // loop_exit
      _
    %384 = vsyncpa [#allocation3], 1
    %s385 = scalar_lea.sflag [#allocation3], 1
    %386 = vsyncpa %s385, 1
    %387 = vsyncpa [#allocation6], 1
    %s388 = scalar_lea.sflag [#allocation6], 1
    %389 = vsyncpa %s388, 1
    %390 = vsyncpa [#allocation4], 1
    %s391 = scalar_lea.sflag [#allocation4], 1
    %392 = vsyncpa %s391, 1
    %393 = vsyncpa [#allocation9], 1
    %s394 = scalar_lea.sflag [#allocation9], 1
    %395 = vsyncpa %s394, 1

</llo_original>
